<compile_context>
chip_gen: v7x
topology: tpu7x:2x2x1
jax: 0.10.0
libtpu: 0.0.40
codegen_flags: <defaults>
</compile_context>

<pallas_src>
import functools

import jax
import jax.numpy as jnp
from jax.experimental import pallas as pl
from jax.experimental.pallas import tpu as pltpu


def _iterated_pow(base, exp_int: int):
    """base ** exp_int via exponentiation-by-squaring (VPU multiplies only)."""
    result = None
    b = base
    e = exp_int
    while e > 0:
        if e & 1:
            result = b if result is None else result * b
        e >>= 1
        if e:
            b = b * b
    return result


def _normalize_kernel(x_ref, o_ref, *, power: float):
    # x_ref / o_ref hold a (tile_b, D) block in VMEM.
    x = x_ref[...]
    xf = x.astype(jnp.float32)  # accumulate the reduction in f32

    if power == 2:
        s = jnp.sum(xf * xf, axis=-1, keepdims=True)
        inv = jax.lax.rsqrt(s)                        # EUP; replaces sqrt + divide
    elif power == 1:
        # Reference does x.pow(1).sum(...) == sum(x) (no abs), then pow(1.0).
        s = jnp.sum(xf, axis=-1, keepdims=True)
        inv = 1.0 / s
    elif float(power).is_integer() and power > 0:
        # Integer power via repeated squaring: stays on the 4 VPU slots
        # instead of the single EUP slot, and matches torch integer-pow for
        # negative bases.  The per-row s ** (-1/p) is only tile_b
        # transcendentals -- negligible.
        xp = _iterated_pow(xf, int(power))
        s = jnp.sum(xp, axis=-1, keepdims=True)
        inv = s ** jnp.float32(-1.0 / power)
    else:
        # True non-integer power: per-element pow (NaN for negative bases,
        # matching torch float pow).
        s = jnp.sum(xf ** jnp.float32(power), axis=-1, keepdims=True)
        inv = s ** jnp.float32(-1.0 / power)

    # Scale in f32; single cast on the way out.
    o_ref[...] = (xf * inv).astype(o_ref.dtype)


def _pick_tile_b(B: int, D: int, itemsize: int, sublane: int) -> int:
    # VMEM budget per grid step:
    #   input  block double-buffered : 2 * tile_b * D * itemsize
    #   output block double-buffered : 2 * tile_b * D * itemsize
    #   ~3 f32 full-tile temporaries : 3 * tile_b * D * 4
    # 12 MiB total keeps us under the tightest scoped default (16 MiB on v5e)
    # and leaves plenty of headroom on v6e (32/128 MiB) and v7x (32/64 MiB).
    budget_bytes = 12 * 1024 * 1024
    per_row_bytes = D * (4 * itemsize + 3 * 4)
    rows = max(sublane, budget_bytes // max(1, per_row_bytes))
    rows = (rows // sublane) * sublane

    b_ceil = -(-B // sublane) * sublane   # B rounded up to a sublane multiple
    tile_b = max(sublane, min(rows, b_ceil))

    # v7x megacore: guarantee >= 2 grid steps whenever B permits, so the
    # "parallel" batch axis can shard across both TensorCores.
    if tile_b >= b_ceil and b_ceil >= 2 * sublane:
        half = -(-(b_ceil // 2) // sublane) * sublane
        tile_b = max(sublane, half)
    return tile_b


def normalize(x: jnp.ndarray, power: float = 2.0, tile_b: int | None = None):
    """L-p normalize along axis 1 of a (B, D) array (PyTorch `Normalize`)."""
    B, D = x.shape
    itemsize = jnp.dtype(x.dtype).itemsize
    sublane = {4: 8, 2: 16, 1: 32}.get(itemsize, 8)

    if tile_b is None:
        tile_b = _pick_tile_b(B, D, itemsize, sublane)
    else:
        tile_b = max(sublane, (tile_b // sublane) * sublane)

    # No padding: Pallas masks the ragged last block on the leading dim.
    grid_b = pl.cdiv(B, tile_b)

    # Note: for D >= 128 (the production feature dim) the output is lane-dense.
    # For the tiny demo D=32 the whole array is a single small block, so the
    # masked-store penalty is negligible and no row-folding is attempted.
    kernel = functools.partial(_normalize_kernel, power=power)
    out = pl.pallas_call(
        kernel,
        out_shape=jax.ShapeDtypeStruct((B, D), x.dtype),
        grid_spec=pltpu.PrefetchScalarGridSpec(
            num_scalar_prefetch=0,
            grid=(grid_b,),
            in_specs=[pl.BlockSpec((tile_b, D), lambda i: (i, 0))],
            out_specs=pl.BlockSpec((tile_b, D), lambda i: (i, 0)),
        ),
        compiler_params=pltpu.CompilerParams(
            dimension_semantics=("parallel",),
        ),
        cost_estimate=pl.CostEstimate(
            flops=3 * B * D,
            transcendentals=B,
            bytes_accessed=2 * B * D * itemsize,
        ),
    )(x)
    return out


if __name__ == "__main__":
    k1, k2 = jax.random.split(jax.random.PRNGKey(0))

    # Shape implied by the module's forward: (batch, feature_dim), dim 1 normalized.
    B, D = 8, 32
    x = jax.random.normal(k1, (B, D), dtype=jnp.float32)
    out = jax.block_until_ready(normalize(x, power=2.0))
    norm = jnp.power(jnp.sum(jnp.power(x, 2.0), axis=1, keepdims=True), 0.5)
    ref = x / norm
    assert out.shape == x.shape and out.dtype == x.dtype
    assert jnp.allclose(out, ref, atol=1e-5, rtol=1e-5)

    # Second case: batch not a multiple of the tile exercises the ragged
    # last-block path (no wrapper pad/slice anymore) and the >=2-step grid.
    B2, D2 = 20, 128
    x2 = jax.random.normal(k2, (B2, D2), dtype=jnp.float32)
    out2 = jax.block_until_ready(normalize(x2, power=2.0))
    ref2 = x2 / jnp.sqrt(jnp.sum(x2 * x2, axis=1, keepdims=True))
    assert out2.shape == x2.shape and out2.dtype == x2.dtype
    assert jnp.allclose(out2, ref2, atol=1e-5, rtol=1e-5)

    # Third case: even-integer power p=4 exercises the repeated-squaring branch.
    out4 = jax.block_until_ready(normalize(x2, power=4.0))
    ref4 = x2 / jnp.power(jnp.sum(jnp.power(x2, 4.0), axis=1, keepdims=True), 0.25)
    assert jnp.allclose(out4, ref4, atol=1e-4, rtol=1e-4)

    print("KERNEL_OK")
</pallas_src>

<mosaic_0001>
module attributes {stable_mosaic.version = 11 : i64} {
  func.func @_normalize_kernel(%arg0: i32, %arg1: memref<8x32xf32, #tpu.memory_space<vmem>>, %arg2: memref<8x32xf32, #tpu.memory_space<vmem>>) attributes {dimension_semantics = [#tpu.dimension_semantics<parallel>], iteration_bounds = array<i64: 1>, scalar_prefetch = 0 : i64, scratch_operands = 0 : i64, tpu.core_type = #tpu.core_type<tc>, window_params = [{transform_indices = @transform_0, window_bounds = array<i64: 8, 32>}, {transform_indices = @transform_1, window_bounds = array<i64: 8, 32>}]} {
    %c0 = arith.constant 0 : index
    %c0_0 = arith.constant 0 : index
    %0 = vector.load %arg1[%c0, %c0_0] : memref<8x32xf32, #tpu.memory_space<vmem>>, vector<8x32xf32>
    %1 = arith.mulf %0, %0 : vector<8x32xf32>
    %cst = arith.constant dense<0.000000e+00> : vector<8xf32>
    %2 = vector.multi_reduction <add>, %1, %cst [1] : vector<8x32xf32> to vector<8xf32>
    %3 = vector.shape_cast %2 : vector<8xf32> to vector<8x1xf32>
    %4 = math.rsqrt %3 : vector<8x1xf32>
    %5 = vector.broadcast %4 : vector<8x1xf32> to vector<8x32xf32>
    %6 = arith.mulf %0, %5 : vector<8x32xf32>
    %c0_1 = arith.constant 0 : index
    %c0_2 = arith.constant 0 : index
    %7 = vector.load %arg2[%c0_1, %c0_2] : memref<8x32xf32, #tpu.memory_space<vmem>>, vector<8x32xf32>
    tpu.vector_store %arg2[%c0_1, %c0_2], %6 {strides = array<i32>} : memref<8x32xf32, #tpu.memory_space<vmem>>, vector<8x32xf32>,
    return
  }
  func.func @transform_0(%arg0: i32) -> (i32, i32) {
    %c0_i32 = arith.constant 0 : i32
    %c0_i32_0 = arith.constant 0 : i32
    return %arg0, %c0_i32 : i32, i32
  }
  func.func @transform_1(%arg0: i32) -> (i32, i32) {
    %c0_i32 = arith.constant 0 : i32
    %c0_i32_0 = arith.constant 0 : i32
    return %arg0, %c0_i32 : i32, i32
  }
}

</mosaic_0001>

<llo_original>
// kernel: tpu_custom_call.1
$region0: #{tpu_custom_call.1}
  #allocation0 [shape = 'u32[]', space=smem, size = 0x4, offset = 0x4, fixed_abs, tag = 'smem constant byte address 0x4 - core index']
  #allocation1 [shape = 'u32[144,128]{1,0:T(1,128)}', space=vmem, size = 0x12000, scoped, tag = 'internal scratch']
  %s0 = inlined_call_operand.hbm [shape: f32[8,32], index: 0, kind: input, shape index: {}]
  %s1 = inlined_call_operand.hbm [shape: f32[8,32], index: 1, kind: output, shape index: {}]
  %s2 = sld [smem:[#allocation0]]
  $region18: #{tpu_custom_call.1} parent=0
    _
  %s4 = ssub.s32 1, %s2
  %s5 = scalar_select 0, %s4, %s2
  $region1: #{tpu_custom_call.1} parent=0
    #allocation2 [shape = 'u8[4096]{0}', space=vmem, size = 0x1000, scoped, tag = 'input window, operand 0, single buffered']
    #allocation3 [shape = 's32[1]{0}', space=sflag, size = 0x4, scoped, tag = 'scoped memory for tpu_custom_call.1']
    #allocation4 [shape = 's32[1]{0}', space=sflag, size = 0x4, scoped, tag = 'scoped memory for tpu_custom_call.1']
    #allocation5 [shape = 'u8[4096]{0}', space=vmem, size = 0x1000, scoped, tag = 'output window, operand 0, single buffered']
    %6 = vsyncpa [#allocation3], 0
    %7 = vsyncpa [#allocation4], 0
    // Predicated region
    $region2: #{tpu_custom_call.1} parent=1 // pred_check
      _
    $region3: #{tpu_custom_call.1} parent=1 // pred_check_branch
      %9 = sbr.rel (0) target = $region5
    $region4: #{tpu_custom_call.1} parent=1 // pred_region
      %s11 = ssub.s32 128, 128
      %12 = vsyncadd [#allocation3], %s11
      %s14 = sshll.u32 [#allocation2], 4
      %s15 = int_to_ptr.vmem [resolvable:$true] %s14
      %17 = dma.hbm_to_vmem [thread:$0]  %s0, 128, %s15, [#allocation3]
    $region5: #{tpu_custom_call.1} parent=1 // pred_fallthru
      _
    // Predicated region
    $region6: #{tpu_custom_call.1} parent=1 // pred_check
      _
    $region7: #{tpu_custom_call.1} parent=1 // pred_check_branch
      %19 = sbr.rel (0) target = $region9
    $region8: #{tpu_custom_call.1} parent=1 // pred_region
      %20 = dma.done [#allocation3], 128
    $region9: #{tpu_custom_call.1} parent=1 // pred_fallthru
      _
    %v21 = vld [vmem:[#allocation2] sm:$0xff]
    %v22 = vmul.f32 %v21, %v21
    %vm23 = vcmask 261120
    %v24 = vsel %vm23, %v22, 0.0
    %25 = vadd.xlane.f32.xlu0 %v24
    %v26 = vpop.xlane.xlu0 %25
    %v27 = vrsqrt.pop %v26
    %v28 = vmul.f32 %v21, %v27
    %29 = vst.msk [vmem:[#allocation5] sm:$0xff] %vm23, %v28
    // Predicated region
    $region10: #{tpu_custom_call.1} parent=1 // pred_check
      _
    $region11: #{tpu_custom_call.1} parent=1 // pred_check_branch
      %31 = sbr.rel (0) target = $region13
    $region12: #{tpu_custom_call.1} parent=1 // pred_region
      %s33 = ssub.s32 128, 128
      %34 = vsyncadd [#allocation4], %s33
      %s36 = sshll.u32 [#allocation5], 4
      %s37 = int_to_ptr.vmem [resolvable:$true] %s36
      %39 = dma.vmem_to_hbm [thread:$0]  %s37, 128, %s1, [#allocation4]
    $region13: #{tpu_custom_call.1} parent=1 // pred_fallthru
      _
    // Predicated region
    $region14: #{tpu_custom_call.1} parent=1 // pred_check
      _
    $region15: #{tpu_custom_call.1} parent=1 // pred_check_branch
      %41 = sbr.rel (0) target = $region17
    $region16: #{tpu_custom_call.1} parent=1 // pred_region
      %42 = dma.done [#allocation4], 128
    $region17: #{tpu_custom_call.1} parent=1 // pred_fallthru
      _
    %43 = vsyncpa [#allocation3], 1
    %44 = vsyncpa [#allocation4], 1

</llo_original>
